<compile_context>
chip_gen: v6e
topology: v6e:2x2x1
jax: 0.10.0
libtpu: 0.0.40
codegen_flags: <defaults>
</compile_context>

<pallas_src>
import jax
import jax.numpy as jnp
from jax.experimental import pallas as pl
from jax.experimental.pallas import tpu as pltpu


def _bow_kernel(tok_ref, out_ref):
    """One grid step: (b_tile) captions x (v_tile) vocabulary columns."""
    j = pl.program_id(1)                                   # vocab tile index
    b_tile, v_tile = out_ref.shape
    L = tok_ref.shape[1]

    tok = tok_ref[...]                                     # (b_tile, L) int32

    # Vocab ids covered by this tile, hoisted above the L loop
    # (JAX does not CSE broadcast_in_dim; build it exactly once).
    vocab_row = (
        jax.lax.broadcasted_iota(jnp.int32, (1, v_tile), 1) + j * v_tile
    )                                                      # (1, v_tile)

    # Statically unrolled L loop (L is small & static): one compare + one
    # masked add per (b, v) per token.  Accumulate in int32; pad id -1 never
    # matches a vocab id >= 0 so padding contributes 0.
    acc = jnp.zeros((b_tile, v_tile), jnp.int32)
    for l in range(L):
        hit = tok[:, l:l + 1] == vocab_row                 # (b_tile, v_tile) mask
        acc = acc + hit.astype(jnp.int32)

    # Single cast at the final store.
    out_ref[...] = acc.astype(out_ref.dtype)


def bow_txt_encoder(
    token_ids: jax.Array,
    ndims: int,
    *,
    v_tile: int = 2048,
    b_tile: int | None = None,
    out_dtype=jnp.float32,
):
    """Pallas text-feature encoder (stand-in for BertTxtEncoder.forward).

    token_ids : int32 [B, L], padded with -1.
    ndims     : vocabulary / feature size V.
    Returns {'text_features': out_dtype [B, ndims]} (per-caption token counts).

    out_dtype defaults to float32 (the original `to_device_and_float16` only
    moves tensors to device without changing dtype); pass jnp.bfloat16 to
    halve the dominant [B, V] HBM writeback if downstream tolerates it
    (counts <= L, exact in bf16 for L <= 256).
    """
    B, L = token_ids.shape
    token_ids = token_ids.astype(jnp.int32)

    # --- lane-dense vocab tile, clamped to the (128-rounded) vocab size ------
    v_tile = min(int(v_tile), pl.cdiv(ndims, 128) * 128)
    v_tile = max(128, (v_tile // 128) * 128)
    v_padded = pl.cdiv(ndims, v_tile) * v_tile             # pad V up, never shrink tile
    n_vtiles = v_padded // v_tile

    # --- batch tile: full batch, or an 8-aligned divisor if B is large -------
    if b_tile is None:
        b_tile = B
        if B > 1024:
            for cand in (1024, 512, 256, 128, 64, 32, 16, 8):
                if B % cand == 0:
                    b_tile = cand
                    break
    assert b_tile == B or (B % b_tile == 0 and b_tile % 8 == 0)
    n_btiles = B // b_tile

    # --- VMEM budget: double-buffered out + tokens + live accumulator --------
    out_itemsize = jnp.dtype(out_dtype).itemsize
    working_bytes = (
        2 * b_tile * v_tile * out_itemsize                 # out, double-buffered
        + 2 * b_tile * L * 4                               # tokens, double-buffered
        + b_tile * v_tile * 4                              # int32 accumulator
    )
    vmem_limit_bytes = int(
        min(max(32 * 1024 * 1024, working_bytes + 8 * 1024 * 1024),
            64 * 1024 * 1024)                              # stay within v7x VMEM
    )

    cost = pl.CostEstimate(
        flops=int(2 * B * L * v_padded),
        transcendentals=0,
        bytes_accessed=int(B * v_padded * out_itemsize + B * L * 4),
    )

    bow = pl.pallas_call(
        _bow_kernel,
        out_shape=jax.ShapeDtypeStruct((B, v_padded), out_dtype),
        grid_spec=pltpu.PrefetchScalarGridSpec(
            num_scalar_prefetch=0,
            grid=(n_btiles, n_vtiles),                     # vocab axis innermost:
            in_specs=[                                     # token block stays resident
                pl.BlockSpec((b_tile, L), lambda i, j: (i, 0)),
            ],
            out_specs=pl.BlockSpec((b_tile, v_tile), lambda i, j: (i, j)),
        ),
        compiler_params=pltpu.CompilerParams(
            dimension_semantics=("parallel", "parallel"),  # megacore-shardable on v7x
            vmem_limit_bytes=vmem_limit_bytes,
        ),
        cost_estimate=cost,
    )(token_ids)

    if v_padded != ndims:
        bow = bow[:, :ndims]                               # drop zero padding columns

    # to_device_and_float16 (as written) only moves to device, no dtype change.
    return {"text_features": bow}


def _bow_reference(token_ids, ndims):
    """Plain JAX reference for correctness checking."""
    onehot = token_ids[:, :, None] == jnp.arange(ndims)[None, None, :]
    return jnp.sum(onehot.astype(jnp.float32), axis=1)


if __name__ == "__main__":
    key = jax.random.PRNGKey(0)

    B, L = 8, 16          # batch of 8 captions, up to 16 tokens each
    NDIMS = 256           # feature / vocabulary size

    # Deterministic "tokenized captions": random vocab ids + padding (-1).
    k_tok, k_len = jax.random.split(key)
    tok = jax.random.randint(k_tok, (B, L), 0, NDIMS, dtype=jnp.int32)
    lens = jax.random.randint(k_len, (B,), 4, L + 1, dtype=jnp.int32)
    pos = jnp.arange(L)[None, :]
    tok = jnp.where(pos < lens[:, None], tok, -1)

    out = bow_txt_encoder(tok, NDIMS)
    feats = jax.block_until_ready(out["text_features"])

    ref = _bow_reference(tok, NDIMS)
    assert feats.shape == (B, NDIMS)
    assert feats.dtype == jnp.float32
    assert jnp.allclose(feats.astype(jnp.float32), ref), "Pallas mismatch vs reference"

    # Second config: non-multiple-of-tile vocab + multi-tile grid (padding path).
    NDIMS2 = 300
    tok2 = jax.random.randint(k_tok, (B, L), 0, NDIMS2, dtype=jnp.int32)
    tok2 = jnp.where(pos < lens[:, None], tok2, -1)
    out2 = bow_txt_encoder(tok2, NDIMS2, v_tile=128)
    feats2 = jax.block_until_ready(out2["text_features"])
    ref2 = _bow_reference(tok2, NDIMS2)
    assert feats2.shape == (B, NDIMS2)
    assert jnp.allclose(feats2.astype(jnp.float32), ref2), "Pallas mismatch (padded vocab)"

    print("KERNEL_OK")
</pallas_src>

<mosaic_0001>
module attributes {stable_mosaic.version = 11 : i64} {
  func.func @_bow_kernel(%arg0: i32, %arg1: i32, %arg2: memref<8x16xi32, #tpu.memory_space<vmem>>, %arg3: memref<8x256xf32, #tpu.memory_space<vmem>>) attributes {dimension_semantics = [#tpu.dimension_semantics<parallel>, #tpu.dimension_semantics<parallel>], iteration_bounds = array<i64: 1, 1>, scalar_prefetch = 0 : i64, scratch_operands = 0 : i64, tpu.core_type = #tpu.core_type<tc>, window_params = [{transform_indices = @transform_0, window_bounds = array<i64: 8, 16>}, {transform_indices = @transform_1, window_bounds = array<i64: 8, 256>}]} {
    %c0 = arith.constant 0 : index
    %c0_0 = arith.constant 0 : index
    %0 = vector.load %arg2[%c0, %c0_0] : memref<8x16xi32, #tpu.memory_space<vmem>>, vector<8x16xi32>
    %1 = tpu.iota {dimensions = array<i32: 1>} : vector<1x256xi32>
    %c256_i32 = arith.constant 256 : i32
    %2 = arith.muli %arg1, %c256_i32 : i32
    %3 = vector.broadcast %2 : i32 to vector<1x256xi32>
    %4 = arith.addi %1, %3 : vector<1x256xi32>
    %c0_i32 = arith.constant 0 : i32
    %5 = vector.broadcast %c0_i32 : i32 to vector<8x256xi32>
    %6 = vector.extract_strided_slice %0 {offsets = [0, 0], sizes = [8, 1], strides = [1, 1]} : vector<8x16xi32> to vector<8x1xi32>
    %7 = vector.broadcast %6 : vector<8x1xi32> to vector<8x256xi32>
    %8 = vector.broadcast %4 : vector<1x256xi32> to vector<8x256xi32>
    %9 = arith.cmpi eq, %7, %8 : vector<8x256xi32>
    %10 = arith.extui %9 : vector<8x256xi1> to vector<8x256xi32>
    %11 = arith.addi %5, %10 : vector<8x256xi32>
    %12 = vector.extract_strided_slice %0 {offsets = [0, 1], sizes = [8, 1], strides = [1, 1]} : vector<8x16xi32> to vector<8x1xi32>
    %13 = vector.broadcast %12 : vector<8x1xi32> to vector<8x256xi32>
    %14 = vector.broadcast %4 : vector<1x256xi32> to vector<8x256xi32>
    %15 = arith.cmpi eq, %13, %14 : vector<8x256xi32>
    %16 = arith.extui %15 : vector<8x256xi1> to vector<8x256xi32>
    %17 = arith.addi %11, %16 : vector<8x256xi32>
    %18 = vector.extract_strided_slice %0 {offsets = [0, 2], sizes = [8, 1], strides = [1, 1]} : vector<8x16xi32> to vector<8x1xi32>
    %19 = vector.broadcast %18 : vector<8x1xi32> to vector<8x256xi32>
    %20 = vector.broadcast %4 : vector<1x256xi32> to vector<8x256xi32>
    %21 = arith.cmpi eq, %19, %20 : vector<8x256xi32>
    %22 = arith.extui %21 : vector<8x256xi1> to vector<8x256xi32>
    %23 = arith.addi %17, %22 : vector<8x256xi32>
    %24 = vector.extract_strided_slice %0 {offsets = [0, 3], sizes = [8, 1], strides = [1, 1]} : vector<8x16xi32> to vector<8x1xi32>
    %25 = vector.broadcast %24 : vector<8x1xi32> to vector<8x256xi32>
    %26 = vector.broadcast %4 : vector<1x256xi32> to vector<8x256xi32>
    %27 = arith.cmpi eq, %25, %26 : vector<8x256xi32>
    %28 = arith.extui %27 : vector<8x256xi1> to vector<8x256xi32>
    %29 = arith.addi %23, %28 : vector<8x256xi32>
    %30 = vector.extract_strided_slice %0 {offsets = [0, 4], sizes = [8, 1], strides = [1, 1]} : vector<8x16xi32> to vector<8x1xi32>
    %31 = vector.broadcast %30 : vector<8x1xi32> to vector<8x256xi32>
    %32 = vector.broadcast %4 : vector<1x256xi32> to vector<8x256xi32>
    %33 = arith.cmpi eq, %31, %32 : vector<8x256xi32>
    %34 = arith.extui %33 : vector<8x256xi1> to vector<8x256xi32>
    %35 = arith.addi %29, %34 : vector<8x256xi32>
    %36 = vector.extract_strided_slice %0 {offsets = [0, 5], sizes = [8, 1], strides = [1, 1]} : vector<8x16xi32> to vector<8x1xi32>
    %37 = vector.broadcast %36 : vector<8x1xi32> to vector<8x256xi32>
    %38 = vector.broadcast %4 : vector<1x256xi32> to vector<8x256xi32>
    %39 = arith.cmpi eq, %37, %38 : vector<8x256xi32>
    %40 = arith.extui %39 : vector<8x256xi1> to vector<8x256xi32>
    %41 = arith.addi %35, %40 : vector<8x256xi32>
    %42 = vector.extract_strided_slice %0 {offsets = [0, 6], sizes = [8, 1], strides = [1, 1]} : vector<8x16xi32> to vector<8x1xi32>
    %43 = vector.broadcast %42 : vector<8x1xi32> to vector<8x256xi32>
    %44 = vector.broadcast %4 : vector<1x256xi32> to vector<8x256xi32>
    %45 = arith.cmpi eq, %43, %44 : vector<8x256xi32>
    %46 = arith.extui %45 : vector<8x256xi1> to vector<8x256xi32>
    %47 = arith.addi %41, %46 : vector<8x256xi32>
    %48 = vector.extract_strided_slice %0 {offsets = [0, 7], sizes = [8, 1], strides = [1, 1]} : vector<8x16xi32> to vector<8x1xi32>
    %49 = vector.broadcast %48 : vector<8x1xi32> to vector<8x256xi32>
    %50 = vector.broadcast %4 : vector<1x256xi32> to vector<8x256xi32>
    %51 = arith.cmpi eq, %49, %50 : vector<8x256xi32>
    %52 = arith.extui %51 : vector<8x256xi1> to vector<8x256xi32>
    %53 = arith.addi %47, %52 : vector<8x256xi32>
    %54 = vector.extract_strided_slice %0 {offsets = [0, 8], sizes = [8, 1], strides = [1, 1]} : vector<8x16xi32> to vector<8x1xi32>
    %55 = vector.broadcast %54 : vector<8x1xi32> to vector<8x256xi32>
    %56 = vector.broadcast %4 : vector<1x256xi32> to vector<8x256xi32>
    %57 = arith.cmpi eq, %55, %56 : vector<8x256xi32>
    %58 = arith.extui %57 : vector<8x256xi1> to vector<8x256xi32>
    %59 = arith.addi %53, %58 : vector<8x256xi32>
    %60 = vector.extract_strided_slice %0 {offsets = [0, 9], sizes = [8, 1], strides = [1, 1]} : vector<8x16xi32> to vector<8x1xi32>
    %61 = vector.broadcast %60 : vector<8x1xi32> to vector<8x256xi32>
    %62 = vector.broadcast %4 : vector<1x256xi32> to vector<8x256xi32>
    %63 = arith.cmpi eq, %61, %62 : vector<8x256xi32>
    %64 = arith.extui %63 : vector<8x256xi1> to vector<8x256xi32>
    %65 = arith.addi %59, %64 : vector<8x256xi32>
    %66 = vector.extract_strided_slice %0 {offsets = [0, 10], sizes = [8, 1], strides = [1, 1]} : vector<8x16xi32> to vector<8x1xi32>
    %67 = vector.broadcast %66 : vector<8x1xi32> to vector<8x256xi32>
    %68 = vector.broadcast %4 : vector<1x256xi32> to vector<8x256xi32>
    %69 = arith.cmpi eq, %67, %68 : vector<8x256xi32>
    %70 = arith.extui %69 : vector<8x256xi1> to vector<8x256xi32>
    %71 = arith.addi %65, %70 : vector<8x256xi32>
    %72 = vector.extract_strided_slice %0 {offsets = [0, 11], sizes = [8, 1], strides = [1, 1]} : vector<8x16xi32> to vector<8x1xi32>
    %73 = vector.broadcast %72 : vector<8x1xi32> to vector<8x256xi32>
    %74 = vector.broadcast %4 : vector<1x256xi32> to vector<8x256xi32>
    %75 = arith.cmpi eq, %73, %74 : vector<8x256xi32>
    %76 = arith.extui %75 : vector<8x256xi1> to vector<8x256xi32>
    %77 = arith.addi %71, %76 : vector<8x256xi32>
    %78 = vector.extract_strided_slice %0 {offsets = [0, 12], sizes = [8, 1], strides = [1, 1]} : vector<8x16xi32> to vector<8x1xi32>
    %79 = vector.broadcast %78 : vector<8x1xi32> to vector<8x256xi32>
    %80 = vector.broadcast %4 : vector<1x256xi32> to vector<8x256xi32>
    %81 = arith.cmpi eq, %79, %80 : vector<8x256xi32>
    %82 = arith.extui %81 : vector<8x256xi1> to vector<8x256xi32>
    %83 = arith.addi %77, %82 : vector<8x256xi32>
    %84 = vector.extract_strided_slice %0 {offsets = [0, 13], sizes = [8, 1], strides = [1, 1]} : vector<8x16xi32> to vector<8x1xi32>
    %85 = vector.broadcast %84 : vector<8x1xi32> to vector<8x256xi32>
    %86 = vector.broadcast %4 : vector<1x256xi32> to vector<8x256xi32>
    %87 = arith.cmpi eq, %85, %86 : vector<8x256xi32>
    %88 = arith.extui %87 : vector<8x256xi1> to vector<8x256xi32>
    %89 = arith.addi %83, %88 : vector<8x256xi32>
    %90 = vector.extract_strided_slice %0 {offsets = [0, 14], sizes = [8, 1], strides = [1, 1]} : vector<8x16xi32> to vector<8x1xi32>
    %91 = vector.broadcast %90 : vector<8x1xi32> to vector<8x256xi32>
    %92 = vector.broadcast %4 : vector<1x256xi32> to vector<8x256xi32>
    %93 = arith.cmpi eq, %91, %92 : vector<8x256xi32>
    %94 = arith.extui %93 : vector<8x256xi1> to vector<8x256xi32>
    %95 = arith.addi %89, %94 : vector<8x256xi32>
    %96 = vector.extract_strided_slice %0 {offsets = [0, 15], sizes = [8, 1], strides = [1, 1]} : vector<8x16xi32> to vector<8x1xi32>
    %97 = vector.broadcast %96 : vector<8x1xi32> to vector<8x256xi32>
    %98 = vector.broadcast %4 : vector<1x256xi32> to vector<8x256xi32>
    %99 = arith.cmpi eq, %97, %98 : vector<8x256xi32>
    %100 = arith.extui %99 : vector<8x256xi1> to vector<8x256xi32>
    %101 = arith.addi %95, %100 : vector<8x256xi32>
    %102 = arith.sitofp %101 : vector<8x256xi32> to vector<8x256xf32>
    %c0_1 = arith.constant 0 : index
    %c0_2 = arith.constant 0 : index
    %103 = vector.load %arg3[%c0_1, %c0_2] : memref<8x256xf32, #tpu.memory_space<vmem>>, vector<8x256xf32>
    tpu.vector_store %arg3[%c0_1, %c0_2], %102 {strides = array<i32>} : memref<8x256xf32, #tpu.memory_space<vmem>>, vector<8x256xf32>,
    return
  }
  func.func @transform_0(%arg0: i32, %arg1: i32) -> (i32, i32) {
    %c0_i32 = arith.constant 0 : i32
    %c0_i32_0 = arith.constant 0 : i32
    return %arg0, %c0_i32 : i32, i32
  }
  func.func @transform_1(%arg0: i32, %arg1: i32) -> (i32, i32) {
    %c0_i32 = arith.constant 0 : i32
    return %arg0, %arg1 : i32, i32
  }
}

</mosaic_0001>

<llo_original>
// kernel: tpu_custom_call.1
$region0: #{tpu_custom_call.1}
  #allocation0 [shape = 'u32[]', space=smem, size = 0x4, offset = 0x4, fixed_abs, tag = 'smem constant byte address 0x4 - core index']
  #allocation1 [shape = 'u32[144,128]{1,0:T(1,128)}', space=vmem, size = 0x12000, scoped, tag = 'internal scratch']
  %s0 = inlined_call_operand.hbm [shape: s32[8,16], index: 0, kind: input, shape index: {}]
  %s1 = inlined_call_operand.hbm [shape: f32[8,256], index: 1, kind: output, shape index: {}]
  %s2 = sld [smem:[#allocation0]]
  $region18: #{tpu_custom_call.1} parent=0
    _
  %s4 = ssub.s32 1, %s2
  %s5 = scalar_select 0, %s4, %s2
  $region1: #{tpu_custom_call.1} parent=0
    #allocation2 [shape = 'u8[4096]{0}', space=vmem, size = 0x1000, scoped, tag = 'input window, operand 0, single buffered']
    #allocation3 [shape = 's32[1]{0}', space=sflag, size = 0x4, scoped, tag = 'scoped memory for tpu_custom_call.1']
    #allocation4 [shape = 's32[1]{0}', space=sflag, size = 0x4, scoped, tag = 'scoped memory for tpu_custom_call.1']
    #allocation5 [shape = 'u8[8192]{0}', space=vmem, size = 0x2000, scoped, tag = 'output window, operand 0, single buffered']
    %6 = vsyncpa [#allocation3], 0
    %7 = vsyncpa [#allocation4], 0
    // Predicated region
    $region2: #{tpu_custom_call.1} parent=1 // pred_check
      _
    $region3: #{tpu_custom_call.1} parent=1 // pred_check_branch
      %9 = sbr.rel (0) target = $region5
    $region4: #{tpu_custom_call.1} parent=1 // pred_region
      %s11 = ssub.s32 128, 128
      %12 = vsyncadd [#allocation3], %s11
      %s14 = sshll.u32 [#allocation2], 4
      %s15 = int_to_ptr.vmem [resolvable:$true] %s14
      %17 = dma.hbm_to_vmem [thread:$0]  %s0, 128, %s15, [#allocation3]
    $region5: #{tpu_custom_call.1} parent=1 // pred_fallthru
      _
    // Predicated region
    $region6: #{tpu_custom_call.1} parent=1 // pred_check
      _
    $region7: #{tpu_custom_call.1} parent=1 // pred_check_branch
      %19 = sbr.rel (0) target = $region9
    $region8: #{tpu_custom_call.1} parent=1 // pred_region
      %20 = dma.done [#allocation3], 128
    $region9: #{tpu_custom_call.1} parent=1 // pred_fallthru
      _
    %v21 = vld [vmem:[#allocation2] sm:$0xff]
    %v22 = vlaneseq
    %v23 = vand.u32 %v22, 127
    %v24 = vadd.s32 %v23, 128
    %s25 = smul.u32 0, 256
    %v26 = vstv %s25
    %v27 = vadd.s32 %v23, %v26
    %v28 = vadd.s32 %v24, %v26
    %29 = vset.pattern.permute.xlu0 0
    %30 = vperm.xlu0 %29, %v21
    %v31 = vpop.permute.xlu0 %30
    %vm32 = vcmp.eq.s32.totalorder %v31, %v27
    %vm33 = vcmp.eq.s32.totalorder %v31, %v28
    %v34 = vsel %vm32, 1, 0
    %v35 = vsel %vm33, 1, 0
    %36 = vset.pattern.permute.xlu0 1
    %37 = vperm.xlu0 %36, %v21
    %v38 = vpop.permute.xlu0 %37
    %vm39 = vcmp.eq.s32.totalorder %v38, %v27
    %vm40 = vcmp.eq.s32.totalorder %v38, %v28
    %v41 = vsel %vm39, 1, 0
    %v42 = vsel %vm40, 1, 0
    %v43 = vadd.s32 %v34, %v41
    %v44 = vadd.s32 %v35, %v42
    %45 = vset.pattern.permute.xlu0 2
    %46 = vperm.xlu0 %45, %v21
    %v47 = vpop.permute.xlu0 %46
    %vm48 = vcmp.eq.s32.totalorder %v47, %v27
    %vm49 = vcmp.eq.s32.totalorder %v47, %v28
    %v50 = vsel %vm48, 1, 0
    %v51 = vsel %vm49, 1, 0
    %v52 = vadd.s32 %v43, %v50
    %v53 = vadd.s32 %v44, %v51
    %54 = vset.pattern.permute.xlu0 3
    %55 = vperm.xlu0 %54, %v21
    %v56 = vpop.permute.xlu0 %55
    %vm57 = vcmp.eq.s32.totalorder %v56, %v27
    %vm58 = vcmp.eq.s32.totalorder %v56, %v28
    %v59 = vsel %vm57, 1, 0
    %v60 = vsel %vm58, 1, 0
    %v61 = vadd.s32 %v52, %v59
    %v62 = vadd.s32 %v53, %v60
    %63 = vset.pattern.permute.xlu0 4
    %64 = vperm.xlu0 %63, %v21
    %v65 = vpop.permute.xlu0 %64
    %vm66 = vcmp.eq.s32.totalorder %v65, %v27
    %vm67 = vcmp.eq.s32.totalorder %v65, %v28
    %v68 = vsel %vm66, 1, 0
    %v69 = vsel %vm67, 1, 0
    %v70 = vadd.s32 %v61, %v68
    %v71 = vadd.s32 %v62, %v69
    %72 = vset.pattern.permute.xlu0 5
    %73 = vperm.xlu0 %72, %v21
    %v74 = vpop.permute.xlu0 %73
    %vm75 = vcmp.eq.s32.totalorder %v74, %v27
    %vm76 = vcmp.eq.s32.totalorder %v74, %v28
    %v77 = vsel %vm75, 1, 0
    %v78 = vsel %vm76, 1, 0
    %v79 = vadd.s32 %v70, %v77
    %v80 = vadd.s32 %v71, %v78
    %81 = vset.pattern.permute.xlu0 6
    %82 = vperm.xlu0 %81, %v21
    %v83 = vpop.permute.xlu0 %82
    %vm84 = vcmp.eq.s32.totalorder %v83, %v27
    %vm85 = vcmp.eq.s32.totalorder %v83, %v28
    %v86 = vsel %vm84, 1, 0
    %v87 = vsel %vm85, 1, 0
    %v88 = vadd.s32 %v79, %v86
    %v89 = vadd.s32 %v80, %v87
    %90 = vset.pattern.permute.xlu0 7
    %91 = vperm.xlu0 %90, %v21
    %v92 = vpop.permute.xlu0 %91
    %vm93 = vcmp.eq.s32.totalorder %v92, %v27
    %vm94 = vcmp.eq.s32.totalorder %v92, %v28
    %v95 = vsel %vm93, 1, 0
    %v96 = vsel %vm94, 1, 0
    %v97 = vadd.s32 %v88, %v95
    %v98 = vadd.s32 %v89, %v96
    %99 = vset.pattern.permute.xlu0 8
    %100 = vperm.xlu0 %99, %v21
    %v101 = vpop.permute.xlu0 %100
    %vm102 = vcmp.eq.s32.totalorder %v101, %v27
    %vm103 = vcmp.eq.s32.totalorder %v101, %v28
    %v104 = vsel %vm102, 1, 0
    %v105 = vsel %vm103, 1, 0
    %v106 = vadd.s32 %v97, %v104
    %v107 = vadd.s32 %v98, %v105
    %108 = vset.pattern.permute.xlu0 9
    %109 = vperm.xlu0 %108, %v21
    %v110 = vpop.permute.xlu0 %109
    %vm111 = vcmp.eq.s32.totalorder %v110, %v27
    %vm112 = vcmp.eq.s32.totalorder %v110, %v28
    %v113 = vsel %vm111, 1, 0
    %v114 = vsel %vm112, 1, 0
    %v115 = vadd.s32 %v106, %v113
    %v116 = vadd.s32 %v107, %v114
    %117 = vset.pattern.permute.xlu0 10
    %118 = vperm.xlu0 %117, %v21
    %v119 = vpop.permute.xlu0 %118
    %vm120 = vcmp.eq.s32.totalorder %v119, %v27
    %vm121 = vcmp.eq.s32.totalorder %v119, %v28
    %v122 = vsel %vm120, 1, 0
    %v123 = vsel %vm121, 1, 0
    %v124 = vadd.s32 %v115, %v122
    %v125 = vadd.s32 %v116, %v123
    %126 = vset.pattern.permute.xlu0 11
    %127 = vperm.xlu0 %126, %v21
    %v128 = vpop.permute.xlu0 %127
    %vm129 = vcmp.eq.s32.totalorder %v128, %v27
    %vm130 = vcmp.eq.s32.totalorder %v128, %v28
    %v131 = vsel %vm129, 1, 0
    %v132 = vsel %vm130, 1, 0
    %v133 = vadd.s32 %v124, %v131
    %v134 = vadd.s32 %v125, %v132
    %135 = vset.pattern.permute.xlu0 12
    %136 = vperm.xlu0 %135, %v21
    %v137 = vpop.permute.xlu0 %136
    %vm138 = vcmp.eq.s32.totalorder %v137, %v27
    %vm139 = vcmp.eq.s32.totalorder %v137, %v28
    %v140 = vsel %vm138, 1, 0
    %v141 = vsel %vm139, 1, 0
    %v142 = vadd.s32 %v133, %v140
    %v143 = vadd.s32 %v134, %v141
    %144 = vset.pattern.permute.xlu0 13
    %145 = vperm.xlu0 %144, %v21
    %v146 = vpop.permute.xlu0 %145
    %vm147 = vcmp.eq.s32.totalorder %v146, %v27
    %vm148 = vcmp.eq.s32.totalorder %v146, %v28
    %v149 = vsel %vm147, 1, 0
    %v150 = vsel %vm148, 1, 0
    %v151 = vadd.s32 %v142, %v149
    %v152 = vadd.s32 %v143, %v150
    %153 = vset.pattern.permute.xlu0 14
    %154 = vperm.xlu0 %153, %v21
    %v155 = vpop.permute.xlu0 %154
    %vm156 = vcmp.eq.s32.totalorder %v155, %v27
    %vm157 = vcmp.eq.s32.totalorder %v155, %v28
    %v158 = vsel %vm156, 1, 0
    %v159 = vsel %vm157, 1, 0
    %v160 = vadd.s32 %v151, %v158
    %v161 = vadd.s32 %v152, %v159
    %162 = vset.pattern.permute.xlu0 15
    %163 = vperm.xlu0 %162, %v21
    %v164 = vpop.permute.xlu0 %163
    %vm165 = vcmp.eq.s32.totalorder %v164, %v27
    %vm166 = vcmp.eq.s32.totalorder %v164, %v28
    %v167 = vsel %vm165, 1, 0
    %v168 = vsel %vm166, 1, 0
    %v169 = vadd.s32 %v160, %v167
    %v170 = vadd.s32 %v161, %v168
    %v171 = vcvt.s32.f32 %v169
    %v172 = vcvt.s32.f32 %v170
    %173 = vst [vmem:[#allocation5] sm:$0xff] %v171
    %174 = vst [vmem:[#allocation5 + $0x8] sm:$0xff] %v172
    // Predicated region
    $region10: #{tpu_custom_call.1} parent=1 // pred_check
      _
    $region11: #{tpu_custom_call.1} parent=1 // pred_check_branch
      %176 = sbr.rel (0) target = $region13
    $region12: #{tpu_custom_call.1} parent=1 // pred_region
      %s178 = ssub.s32 256, 256
      %179 = vsyncadd [#allocation4], %s178
      %s181 = sshll.u32 [#allocation5], 4
      %s182 = int_to_ptr.vmem [resolvable:$true] %s181
      %184 = dma.vmem_to_hbm [thread:$0]  %s182, 256, %s1, [#allocation4]
    $region13: #{tpu_custom_call.1} parent=1 // pred_fallthru
      _
    // Predicated region
    $region14: #{tpu_custom_call.1} parent=1 // pred_check
      _
    $region15: #{tpu_custom_call.1} parent=1 // pred_check_branch
      %186 = sbr.rel (0) target = $region17
    $region16: #{tpu_custom_call.1} parent=1 // pred_region
      %187 = dma.done [#allocation4], 256
    $region17: #{tpu_custom_call.1} parent=1 // pred_fallthru
      _
    %188 = vsyncpa [#allocation3], 1
    %189 = vsyncpa [#allocation4], 1

</llo_original>
